<compile_context>
chip_gen: v6e
topology: v6e:2x2x1
jax: 0.10.0
libtpu: 0.0.40
codegen_flags: <defaults>
</compile_context>

<pallas_src>
import functools

import jax
import jax.numpy as jnp
import numpy as np
from jax.experimental import pallas as pl
from jax.experimental.pallas import tpu as pltpu


# ------------------------------- kernel ------------------------------------

def gconv_lstm_kernel(l2_ref, z_ref, c_ref, wp_ref, wc_ref, bg_ref, out_ref,
                      *, K, Ch, CinCh, Bt, N, mxdt):
    """One batch tile of the GConvLSTM cell.

    l2_ref : [N, N]                 2 * L_hat (shared over batch)
    z_ref  : [Bt, N, Cin+Ch]        [X | H_prev] fused along channels
    c_ref  : [Bt, N, Ch]            previous cell state
    wp_ref : [K*(Cin+Ch), 4*Ch]     fused ChebConv weights, rows (k, c), cols i|f|c|o
    wc_ref : [1, 4*Ch]              peephole weights [w_c_i | w_c_f | 0 | w_c_o]
    bg_ref : [1, 4*Ch]              gate biases      [b_i   | b_f   | b_c | b_o]
    out_ref: [Bt, N, 2*Ch]          packed [H_new | C_new]
    """
    f32 = jnp.float32
    Wp = wp_ref[...].astype(mxdt)
    wc = wc_ref[...]
    bg = bg_ref[...]

    # ---- batch-concatenate activations along lanes -> [N, Bt*(Cin+Ch)] ----
    if Bt == 1:
        Zcat = z_ref[0]
    else:
        Zcat = jnp.concatenate([z_ref[b] for b in range(Bt)], axis=-1)

    # ---- single Chebyshev recurrence for X|H and all Bt batches -----------
    # T_0 = Z, T_1 = L@Z = 0.5*(2L)@Z, T_k = (2L)@T_{k-1} - T_{k-2}.
    # Carries stay f32; only the MXU operands are cast to `mxdt`.
    Ts = [Zcat]
    if K > 1:
        L2m = l2_ref[...].astype(mxdt)
        Ts.append(0.5 * jnp.dot(L2m, Zcat.astype(mxdt),
                                preferred_element_type=f32))
        for _ in range(2, K):
            Ts.append(jnp.dot(L2m, Ts[-1].astype(mxdt),
                              preferred_element_type=f32) - Ts[-2])

    # ---- fuse the K order-projections and Bt batches into ONE matmul ------
    # rows ordered (b, n); columns ordered (k, c) to match wp_ref.
    slabs = []
    for b in range(Bt):
        lo = b * CinCh
        cols = [Ts[k][:, lo:lo + CinCh] for k in range(K)]
        slabs.append(cols[0] if K == 1 else jnp.concatenate(cols, axis=-1))
    Tall = slabs[0] if Bt == 1 else jnp.concatenate(slabs, axis=0)   # [Bt*N, K*CinCh]
    S = jnp.dot(Tall.astype(mxdt), Wp, preferred_element_type=f32)   # [Bt*N, 4*Ch]

    # ---- lane-dense gating over the whole packed i|f|c|o slab --------------
    if Bt == 1:
        Cp = c_ref[0]
    else:
        Cp = jnp.concatenate([c_ref[b] for b in range(Bt)], axis=0)  # [Bt*N, Ch]
    Cp = Cp.astype(f32)
    Cp4 = jnp.concatenate([Cp, Cp, Cp, Cp], axis=-1)                 # [Bt*N, 4*Ch]
    G = S + wc * Cp4 + bg
    lane = jax.lax.broadcasted_iota(jnp.int32, G.shape, 1)
    is_cgate = (lane >= 2 * Ch) & (lane < 3 * Ch)
    A = jnp.where(is_cgate, jnp.tanh(G), jax.nn.sigmoid(G))          # I|F|T|O

    I = A[:, 0 * Ch:1 * Ch]
    F = A[:, 1 * Ch:2 * Ch]
    T = A[:, 2 * Ch:3 * Ch]
    # Output gate was computed from the OLD cell state (exact module forward).
    O = A[:, 3 * Ch:4 * Ch]
    Cn = F * Cp + I * T
    Hn = O * jnp.tanh(Cn)

    HC = jnp.concatenate([Hn, Cn], axis=-1).astype(out_ref.dtype)    # [Bt*N, 2*Ch]
    for b in range(Bt):
        out_ref[b] = HC[b * N:(b + 1) * N, :]


# ------------------------------- wrapper ------------------------------------

def _pick_batch_tile(B, CinCh, target_lanes=256):
    """Largest divisor of B whose lane-concatenated width stays <= target.

    target_lanes ~ 256 fills the v6e/v7x MXU; anything >= 128 already fills
    v5e. Falls back to 1 when a single batch element is already wide.
    """
    bt = 1
    for cand in range(1, B + 1):
        if B % cand == 0 and cand * CinCh <= max(target_lanes, CinCh):
            bt = cand
    return bt


def gconv_lstm_cell(L_hat, X, H, C, Wx, Wh, WC, Bg, *,
                    matmul_dtype=jnp.bfloat16, batch_tile=None):
    """One GConvLSTM cell step. Returns (H_new, C_new), each [B, N, Ch].

    matmul_dtype: dtype of MXU operands (accumulation is always f32).
                  jnp.bfloat16 hits MXU peak on v5e/v6e/v7x; pass jnp.float32
                  for bit-faithful f32 semantics.
    """
    B, N, Cin = X.shape
    Ch = H.shape[-1]
    K = Wx.shape[0]
    CinCh = Cin + Ch

    # Fuse X|H along channels -> one Chebyshev recurrence instead of two.
    Z = jnp.concatenate([X, H], axis=-1)                                  # [B, N, Cin+Ch]
    # Fuse the K per-order projections: rows ordered (k, c) with c = [X | H].
    Wp = jnp.concatenate([Wx, Wh], axis=1).reshape(K * CinCh, 4 * Ch)     # [K*CinCh, 4Ch]
    # Gate-major packed peephole / bias vectors: lanes = [i | f | c | o].
    WCg = WC.reshape(1, 4 * Ch)
    Bgg = Bg.reshape(1, 4 * Ch)
    # Precompute 2*L_hat (exact power-of-two scale) -> no per-order VPU scale.
    L2 = L_hat * 2.0

    Bt = _pick_batch_tile(B, CinCh) if batch_tile is None else batch_tile
    assert B % Bt == 0, "batch_tile must divide the batch size"
    grid = (B // Bt,)

    kernel = functools.partial(gconv_lstm_kernel, K=K, Ch=Ch, CinCh=CinCh,
                               Bt=Bt, N=N, mxdt=matmul_dtype)

    # Advisory cost estimate for XLA scheduling around the custom call.
    flops = (2 * B * max(K - 1, 0) * N * N * CinCh          # L @ T recurrence
             + 2 * B * N * K * CinCh * 4 * Ch               # fused projection
             + 12 * B * N * Ch)                             # gating elementwise
    transcendentals = 9 * B * N * Ch                        # sigmoid/tanh slabs + tanh(C)
    bytes_accessed = 4 * (N * N + B * N * CinCh + B * N * Ch
                          + K * CinCh * 4 * Ch + 2 * 4 * Ch + B * N * 2 * Ch)

    out = pl.pallas_call(
        kernel,
        out_shape=jax.ShapeDtypeStruct((B, N, 2 * Ch), X.dtype),
        grid_spec=pltpu.PrefetchScalarGridSpec(
            num_scalar_prefetch=0,
            grid=grid,
            in_specs=[
                pl.BlockSpec((N, N), lambda g: (0, 0)),                # 2*L_hat (shared)
                pl.BlockSpec((Bt, N, CinCh), lambda g: (g, 0, 0)),     # [X | H]
                pl.BlockSpec((Bt, N, Ch), lambda g: (g, 0, 0)),        # C_prev
                pl.BlockSpec((K * CinCh, 4 * Ch), lambda g: (0, 0)),   # fused Cheb weights
                pl.BlockSpec((1, 4 * Ch), lambda g: (0, 0)),           # peephole w_c
                pl.BlockSpec((1, 4 * Ch), lambda g: (0, 0)),           # gate biases
            ],
            out_specs=pl.BlockSpec((Bt, N, 2 * Ch), lambda g: (g, 0, 0)),
        ),
        compiler_params=pltpu.CompilerParams(
            dimension_semantics=("parallel",),
            vmem_limit_bytes=32 * 1024 * 1024),
        cost_estimate=pl.CostEstimate(flops=flops,
                                      transcendentals=transcendentals,
                                      bytes_accessed=bytes_accessed),
    )(L2, Z, C, Wp, WCg, Bgg)

    return out[..., :Ch], out[..., Ch:]


# -------------------- glue: graph operator + parameters --------------------

def scaled_laplacian_dense(edge_index, edge_weight, num_nodes, lambda_max):
    """Dense L_hat = (2/lambda_max) * (I - D^-1/2 A D^-1/2) - I  (sym norm)."""
    A = jnp.zeros((num_nodes, num_nodes), jnp.float32)
    A = A.at[edge_index[0], edge_index[1]].add(edge_weight)
    A = A * (1.0 - jnp.eye(num_nodes, dtype=jnp.float32))      # remove self loops
    deg = A.sum(axis=1)
    dinv = jnp.where(deg > 0, 1.0 / jnp.sqrt(deg), 0.0)
    L = jnp.eye(num_nodes, dtype=jnp.float32) - dinv[:, None] * A * dinv[None, :]
    return (2.0 / lambda_max) * L - jnp.eye(num_nodes, dtype=jnp.float32)


def glorot(key, shape):
    # PyG glorot: uniform(-s, s), s = sqrt(6 / (size(-2) + size(-1)))
    s = np.sqrt(6.0 / (shape[-2] + shape[-1]))
    return jax.random.uniform(key, shape, jnp.float32, -s, s)


def make_params(key, Cin, Ch, K):
    keys = jax.random.split(key, 12)
    # ChebConv weights, gate order i, f, c, o (ChebConv biases are zeros -> folded into Bg)
    Wx = jnp.concatenate([glorot(keys[g], (K, Cin, Ch)) for g in range(4)], axis=-1)
    Wh = jnp.concatenate([glorot(keys[4 + g], (K, Ch, Ch)) for g in range(4)], axis=-1)
    # w_c_i / w_c_f / w_c_o : glorot (module._set_parameters); slot for 'c' gate is zero
    wci = glorot(keys[8], (1, Ch))
    wcf = glorot(keys[9], (1, Ch))
    wco = glorot(keys[10], (1, Ch))
    WC = jnp.concatenate([wci, wcf, jnp.zeros((1, Ch), jnp.float32), wco], axis=0)  # [4, Ch]
    # b_i, b_f, b_c, b_o : zeros (module._set_parameters) + zero ChebConv biases
    Bg = jnp.zeros((4, Ch), jnp.float32)
    return Wx, Wh, WC, Bg


def reference(L_hat, X, H, C, Wx, Wh, WC, Bg, K, Ch):
    """Pure-JAX f32 reference with the module's exact forward semantics."""
    def cheb(Z, W):
        Ts = [Z]
        if K > 1:
            Ts.append(jnp.einsum('nm,bmc->bnc', L_hat, Z))
        for _ in range(2, K):
            Ts.append(2.0 * jnp.einsum('nm,bmc->bnc', L_hat, Ts[-1]) - Ts[-2])
        return sum(jnp.einsum('bnc,cd->bnd', Ts[k], W[k]) for k in range(K))
    S = cheb(X, Wx) + cheb(H, Wh)
    I = jax.nn.sigmoid(S[..., 0:Ch] + WC[0] * C + Bg[0])
    F = jax.nn.sigmoid(S[..., Ch:2 * Ch] + WC[1] * C + Bg[1])
    T = jnp.tanh(S[..., 2 * Ch:3 * Ch] + Bg[2])
    Cn = F * C + I * T
    O = jax.nn.sigmoid(S[..., 3 * Ch:4 * Ch] + WC[3] * C + Bg[3])  # old C (module forward)
    return O * jnp.tanh(Cn), Cn


# ---------------------------------- main ------------------------------------

if __name__ == "__main__":
    B, N, Cin, Ch, K = 2, 16, 4, 32, 3
    lambda_max = 2.0

    key = jax.random.PRNGKey(0)
    k_x, k_h, k_c, k_w, k_p = jax.random.split(key, 5)

    # deterministic ring graph (undirected) with random positive weights
    src = np.arange(N)
    dst = (np.arange(N) + 1) % N
    edge_index = jnp.asarray(
        np.stack([np.concatenate([src, dst]), np.concatenate([dst, src])]), jnp.int32)
    ew_half = jax.random.uniform(k_w, (N,), jnp.float32, 0.5, 1.5)
    edge_weight = jnp.concatenate([ew_half, ew_half])

    L_hat = scaled_laplacian_dense(edge_index, edge_weight, N, lambda_max)

    X = jax.random.normal(k_x, (B, N, Cin), jnp.float32)
    H0 = jax.random.normal(k_h, (B, N, Ch), jnp.float32)
    C0 = jax.random.normal(k_c, (B, N, Ch), jnp.float32)

    Wx, Wh, WC, Bg = make_params(k_p, Cin, Ch, K)

    Hr, Cr = reference(L_hat, X, H0, C0, Wx, Wh, WC, Bg, K, Ch)

    # 1) Semantic check: f32 MXU operands. Tolerance covers TPU default matmul
    #    precision and the different accumulation order of the fused kernel.
    Hn32, Cn32 = gconv_lstm_cell(L_hat, X, H0, C0, Wx, Wh, WC, Bg,
                                 matmul_dtype=jnp.float32)
    jax.block_until_ready((Hn32, Cn32))
    np.testing.assert_allclose(np.asarray(Hn32), np.asarray(Hr), rtol=5e-3, atol=5e-3)
    np.testing.assert_allclose(np.asarray(Cn32), np.asarray(Cr), rtol=5e-3, atol=5e-3)

    # 2) Fast path (default): bf16 MXU operands, f32 accumulation/gating.
    #    Loose sanity tolerance vs. the f32 reference (bf16 rounding only).
    Hn, Cn = gconv_lstm_cell(L_hat, X, H0, C0, Wx, Wh, WC, Bg)
    jax.block_until_ready((Hn, Cn))
    np.testing.assert_allclose(np.asarray(Hn), np.asarray(Hr), rtol=5e-2, atol=1e-1)
    np.testing.assert_allclose(np.asarray(Cn), np.asarray(Cr), rtol=5e-2, atol=1e-1)

    print("KERNEL_OK")
</pallas_src>

<mosaic_0001>
module attributes {stable_mosaic.version = 11 : i64} {
  func.func @gconv_lstm_kernel(%arg0: i32, %arg1: memref<16x16xf32, #tpu.memory_space<vmem>>, %arg2: memref<2x16x36xf32, #tpu.memory_space<vmem>>, %arg3: memref<2x16x32xf32, #tpu.memory_space<vmem>>, %arg4: memref<108x128xf32, #tpu.memory_space<vmem>>, %arg5: memref<1x128xf32, #tpu.memory_space<vmem>>, %arg6: memref<1x128xf32, #tpu.memory_space<vmem>>, %arg7: memref<2x16x64xf32, #tpu.memory_space<vmem>>) attributes {dimension_semantics = [#tpu.dimension_semantics<parallel>], iteration_bounds = array<i64: 1>, scalar_prefetch = 0 : i64, scratch_operands = 0 : i64, tpu.core_type = #tpu.core_type<tc>, window_params = [{pipeline_mode = #tpu.pipeline_mode<synchronous>, transform_indices = @transform_0, window_bounds = array<i64: 16, 16>}, {transform_indices = @transform_1, window_bounds = array<i64: 2, 16, 36>}, {transform_indices = @transform_2, window_bounds = array<i64: 2, 16, 32>}, {pipeline_mode = #tpu.pipeline_mode<synchronous>, transform_indices = @transform_3, window_bounds = array<i64: 108, 128>}, {pipeline_mode = #tpu.pipeline_mode<synchronous>, transform_indices = @transform_4, window_bounds = array<i64: 1, 128>}, {pipeline_mode = #tpu.pipeline_mode<synchronous>, transform_indices = @transform_5, window_bounds = array<i64: 1, 128>}, {transform_indices = @transform_6, window_bounds = array<i64: 2, 16, 64>}]} {
    %c0 = arith.constant 0 : index
    %c0_0 = arith.constant 0 : index
    %0 = vector.load %arg4[%c0, %c0_0] : memref<108x128xf32, #tpu.memory_space<vmem>>, vector<108x128xf32>
    %c0_1 = arith.constant 0 : index
    %c0_2 = arith.constant 0 : index
    %1 = vector.load %arg5[%c0_1, %c0_2] : memref<1x128xf32, #tpu.memory_space<vmem>>, vector<1x128xf32>
    %c0_3 = arith.constant 0 : index
    %c0_4 = arith.constant 0 : index
    %2 = vector.load %arg6[%c0_3, %c0_4] : memref<1x128xf32, #tpu.memory_space<vmem>>, vector<1x128xf32>
    %c0_5 = arith.constant 0 : index
    %c0_6 = arith.constant 0 : index
    %c0_7 = arith.constant 0 : index
    %3 = vector.load %arg2[%c0_5, %c0_6, %c0_7] : memref<2x16x36xf32, #tpu.memory_space<vmem>>, vector<1x16x36xf32>
    %4 = vector.shape_cast %3 : vector<1x16x36xf32> to vector<16x36xf32>
    %c1 = arith.constant 1 : index
    %c0_8 = arith.constant 0 : index
    %c0_9 = arith.constant 0 : index
    %5 = vector.load %arg2[%c1, %c0_8, %c0_9] : memref<2x16x36xf32, #tpu.memory_space<vmem>>, vector<1x16x36xf32>
    %6 = vector.shape_cast %5 : vector<1x16x36xf32> to vector<16x36xf32>
    %7 = tpu.concatenate %4, %6 in 1 : vector<16x36xf32>, vector<16x36xf32> -> vector<16x72xf32>
    %c0_10 = arith.constant 0 : index
    %c0_11 = arith.constant 0 : index
    %8 = vector.load %arg1[%c0_10, %c0_11] : memref<16x16xf32, #tpu.memory_space<vmem>>, vector<16x16xf32>
    %cst = arith.constant dense<0.000000e+00> : vector<16x72xf32>
    %9 = tpu.matmul %8, %7, %cst {dimension_numbers = #tpu.dot_dimension_numbers<[1], [0], [0], [1], [0, 0, 1, 1], [], []>} : vector<16x16xf32>, vector<16x72xf32>, vector<16x72xf32> -> vector<16x72xf32>
    %cst_12 = arith.constant 5.000000e-01 : f32
    %10 = vector.broadcast %cst_12 : f32 to vector<16x72xf32>
    %11 = arith.mulf %10, %9 : vector<16x72xf32>
    %cst_13 = arith.constant dense<0.000000e+00> : vector<16x72xf32>
    %12 = tpu.matmul %8, %11, %cst_13 {dimension_numbers = #tpu.dot_dimension_numbers<[1], [0], [0], [1], [0, 0, 1, 1], [], []>} : vector<16x16xf32>, vector<16x72xf32>, vector<16x72xf32> -> vector<16x72xf32>
    %13 = arith.subf %12, %7 : vector<16x72xf32>
    %14 = vector.extract_strided_slice %7 {offsets = [0, 0], sizes = [16, 36], strides = [1, 1]} : vector<16x72xf32> to vector<16x36xf32>
    %15 = vector.extract_strided_slice %11 {offsets = [0, 0], sizes = [16, 36], strides = [1, 1]} : vector<16x72xf32> to vector<16x36xf32>
    %16 = vector.extract_strided_slice %13 {offsets = [0, 0], sizes = [16, 36], strides = [1, 1]} : vector<16x72xf32> to vector<16x36xf32>
    %17 = tpu.concatenate %14, %15, %16 in 1 : vector<16x36xf32>, vector<16x36xf32>, vector<16x36xf32> -> vector<16x108xf32>
    %18 = vector.extract_strided_slice %7 {offsets = [0, 36], sizes = [16, 36], strides = [1, 1]} : vector<16x72xf32> to vector<16x36xf32>
    %19 = vector.extract_strided_slice %11 {offsets = [0, 36], sizes = [16, 36], strides = [1, 1]} : vector<16x72xf32> to vector<16x36xf32>
    %20 = vector.extract_strided_slice %13 {offsets = [0, 36], sizes = [16, 36], strides = [1, 1]} : vector<16x72xf32> to vector<16x36xf32>
    %21 = tpu.concatenate %18, %19, %20 in 1 : vector<16x36xf32>, vector<16x36xf32>, vector<16x36xf32> -> vector<16x108xf32>
    %22 = tpu.concatenate %17, %21 in 0 : vector<16x108xf32>, vector<16x108xf32> -> vector<32x108xf32>
    %cst_14 = arith.constant dense<0.000000e+00> : vector<32x128xf32>
    %23 = tpu.matmul %22, %0, %cst_14 {dimension_numbers = #tpu.dot_dimension_numbers<[1], [0], [0], [1], [0, 0, 1, 1], [], []>} : vector<32x108xf32>, vector<108x128xf32>, vector<32x128xf32> -> vector<32x128xf32>
    %c0_15 = arith.constant 0 : index
    %c0_16 = arith.constant 0 : index
    %c0_17 = arith.constant 0 : index
    %24 = vector.load %arg3[%c0_15, %c0_16, %c0_17] : memref<2x16x32xf32, #tpu.memory_space<vmem>>, vector<1x16x32xf32>
    %25 = vector.shape_cast %24 : vector<1x16x32xf32> to vector<16x32xf32>
    %c1_18 = arith.constant 1 : index
    %c0_19 = arith.constant 0 : index
    %c0_20 = arith.constant 0 : index
    %26 = vector.load %arg3[%c1_18, %c0_19, %c0_20] : memref<2x16x32xf32, #tpu.memory_space<vmem>>, vector<1x16x32xf32>
    %27 = vector.shape_cast %26 : vector<1x16x32xf32> to vector<16x32xf32>
    %28 = tpu.concatenate %25, %27 in 0 : vector<16x32xf32>, vector<16x32xf32> -> vector<32x32xf32>
    %29 = tpu.concatenate %28, %28, %28, %28 in 1 : vector<32x32xf32>, vector<32x32xf32>, vector<32x32xf32>, vector<32x32xf32> -> vector<32x128xf32>
    %30 = vector.broadcast %1 : vector<1x128xf32> to vector<32x128xf32>
    %31 = arith.mulf %30, %29 : vector<32x128xf32>
    %32 = arith.addf %23, %31 : vector<32x128xf32>
    %33 = vector.broadcast %2 : vector<1x128xf32> to vector<32x128xf32>
    %34 = arith.addf %32, %33 : vector<32x128xf32>
    %35 = tpu.iota {dimensions = array<i32: 1>} : vector<32x128xi32>
    %c64_i32 = arith.constant 64 : i32
    %36 = vector.broadcast %c64_i32 : i32 to vector<32x128xi32>
    %37 = arith.cmpi sge, %35, %36 : vector<32x128xi32>
    %c96_i32 = arith.constant 96 : i32
    %38 = vector.broadcast %c96_i32 : i32 to vector<32x128xi32>
    %39 = arith.cmpi slt, %35, %38 : vector<32x128xi32>
    %40 = arith.andi %37, %39 : vector<32x128xi1>
    %41 = math.tanh %34 : vector<32x128xf32>
    %42 = arith.negf %34 : vector<32x128xf32>
    %43 = math.exp %42 : vector<32x128xf32>
    %cst_21 = arith.constant 1.000000e+00 : f32
    %44 = vector.broadcast %cst_21 : f32 to vector<32x128xf32>
    %45 = arith.addf %44, %43 : vector<32x128xf32>
    %46 = arith.divf %44, %45 : vector<32x128xf32>
    %47 = arith.select %40, %41, %46 : vector<32x128xi1>, vector<32x128xf32>
    %48 = vector.extract_strided_slice %47 {offsets = [0, 0], sizes = [32, 32], strides = [1, 1]} : vector<32x128xf32> to vector<32x32xf32>
    %49 = vector.extract_strided_slice %47 {offsets = [0, 32], sizes = [32, 32], strides = [1, 1]} : vector<32x128xf32> to vector<32x32xf32>
    %50 = vector.extract_strided_slice %47 {offsets = [0, 64], sizes = [32, 32], strides = [1, 1]} : vector<32x128xf32> to vector<32x32xf32>
    %51 = vector.extract_strided_slice %47 {offsets = [0, 96], sizes = [32, 32], strides = [1, 1]} : vector<32x128xf32> to vector<32x32xf32>
    %52 = arith.mulf %49, %28 : vector<32x32xf32>
    %53 = arith.mulf %48, %50 : vector<32x32xf32>
    %54 = arith.addf %52, %53 : vector<32x32xf32>
    %55 = math.tanh %54 : vector<32x32xf32>
    %56 = arith.mulf %51, %55 : vector<32x32xf32>
    %57 = tpu.concatenate %56, %54 in 1 : vector<32x32xf32>, vector<32x32xf32> -> vector<32x64xf32>
    %58 = vector.extract_strided_slice %57 {offsets = [0, 0], sizes = [16, 64], strides = [1, 1]} : vector<32x64xf32> to vector<16x64xf32>
    %c0_22 = arith.constant 0 : index
    %c0_23 = arith.constant 0 : index
    %c0_24 = arith.constant 0 : index
    %59 = vector.load %arg7[%c0_22, %c0_23, %c0_24] : memref<2x16x64xf32, #tpu.memory_space<vmem>>, vector<1x16x64xf32>
    %60 = vector.shape_cast %59 : vector<1x16x64xf32> to vector<16x64xf32>
    %61 = vector.shape_cast %58 : vector<16x64xf32> to vector<1x16x64xf32>
    tpu.vector_store %arg7[%c0_22, %c0_23, %c0_24], %61 {strides = array<i32>} : memref<2x16x64xf32, #tpu.memory_space<vmem>>, vector<1x16x64xf32>,
    %62 = vector.extract_strided_slice %57 {offsets = [16, 0], sizes = [16, 64], strides = [1, 1]} : vector<32x64xf32> to vector<16x64xf32>
    %c1_25 = arith.constant 1 : index
    %c0_26 = arith.constant 0 : index
    %c0_27 = arith.constant 0 : index
    %63 = vector.load %arg7[%c1_25, %c0_26, %c0_27] : memref<2x16x64xf32, #tpu.memory_space<vmem>>, vector<1x16x64xf32>
    %64 = vector.shape_cast %63 : vector<1x16x64xf32> to vector<16x64xf32>
    %65 = vector.shape_cast %62 : vector<16x64xf32> to vector<1x16x64xf32>
    tpu.vector_store %arg7[%c1_25, %c0_26, %c0_27], %65 {strides = array<i32>} : memref<2x16x64xf32, #tpu.memory_space<vmem>>, vector<1x16x64xf32>,
    return
  }
  func.func @transform_0(%arg0: i32) -> (i32, i32) {
    %c0_i32 = arith.constant 0 : i32
    %c0_i32_0 = arith.constant 0 : i32
    %c0_i32_1 = arith.constant 0 : i32
    return %c0_i32, %c0_i32_0 : i32, i32
  }
  func.func @transform_1(%arg0: i32) -> (i32, i32, i32) {
    %c0_i32 = arith.constant 0 : i32
    %c0_i32_0 = arith.constant 0 : i32
    %c0_i32_1 = arith.constant 0 : i32
    return %arg0, %c0_i32, %c0_i32_0 : i32, i32, i32
  }
  func.func @transform_2(%arg0: i32) -> (i32, i32, i32) {
    %c0_i32 = arith.constant 0 : i32
    %c0_i32_0 = arith.constant 0 : i32
    %c0_i32_1 = arith.constant 0 : i32
    return %arg0, %c0_i32, %c0_i32_0 : i32, i32, i32
  }
  func.func @transform_3(%arg0: i32) -> (i32, i32) {
    %c0_i32 = arith.constant 0 : i32
    %c0_i32_0 = arith.constant 0 : i32
    %c0_i32_1 = arith.constant 0 : i32
    return %c0_i32, %c0_i32_0 : i32, i32
  }
  func.func @transform_4(%arg0: i32) -> (i32, i32) {
    %c0_i32 = arith.constant 0 : i32
    %c0_i32_0 = arith.constant 0 : i32
    %c0_i32_1 = arith.constant 0 : i32
    return %c0_i32, %c0_i32_0 : i32, i32
  }
  func.func @transform_5(%arg0: i32) -> (i32, i32) {
    %c0_i32 = arith.constant 0 : i32
    %c0_i32_0 = arith.constant 0 : i32
    %c0_i32_1 = arith.constant 0 : i32
    return %c0_i32, %c0_i32_0 : i32, i32
  }
  func.func @transform_6(%arg0: i32) -> (i32, i32, i32) {
    %c0_i32 = arith.constant 0 : i32
    %c0_i32_0 = arith.constant 0 : i32
    %c0_i32_1 = arith.constant 0 : i32
    return %arg0, %c0_i32, %c0_i32_0 : i32, i32, i32
  }
}

</mosaic_0001>

<llo_original>
// kernel: tpu_custom_call.1
$region0: #{tpu_custom_call.1}
  #allocation0 [shape = 'u32[]', space=smem, size = 0x4, offset = 0x4, fixed_abs, tag = 'smem constant byte address 0x4 - core index']
  #allocation1 [shape = 'u32[144,128]{1,0:T(1,128)}', space=vmem, size = 0x12000, scoped, tag = 'internal scratch']
  %s0 = inlined_call_operand.hbm [shape: f32[16,16], index: 0, kind: input, shape index: {}]
  %s1 = inlined_call_operand.hbm [shape: f32[2,16,36], index: 1, kind: input, shape index: {}]
  %s2 = inlined_call_operand.hbm [shape: f32[2,16,32], index: 2, kind: input, shape index: {}]
  %s3 = inlined_call_operand.hbm [shape: f32[108,128], index: 3, kind: input, shape index: {}]
  %s4 = inlined_call_operand.vmem [shape: f32[1,128], index: 4, kind: input, shape index: {}]
  %s5 = inlined_call_operand.vmem [shape: f32[1,128], index: 5, kind: input, shape index: {}]
  %s6 = inlined_call_operand.hbm [shape: f32[2,16,64], index: 6, kind: output, shape index: {}]
  %s7 = sld [smem:[#allocation0]]
  $region50: #{tpu_custom_call.1} parent=0
    _
  %s9 = ssub.s32 1, %s7
  %s10 = scalar_select 0, %s9, %s7
  $region1: #{tpu_custom_call.1} parent=0
    #allocation2 [shape = 'u8[8192]{0}', space=vmem, size = 0x2000, scoped, tag = 'input window, operand 0, single buffered']
    #allocation3 [shape = 's32[1]{0}', space=sflag, size = 0x4, scoped, tag = 'scoped memory for tpu_custom_call.1']
    #allocation4 [shape = 's32[1]{0}', space=sflag, size = 0x4, scoped, tag = 'scoped memory for tpu_custom_call.1']
    #allocation5 [shape = 'u8[16384]{0}', space=vmem, size = 0x4000, scoped, tag = 'input window, operand 1, single buffered']
    #allocation6 [shape = 's32[1]{0}', space=sflag, size = 0x4, scoped, tag = 'scoped memory for tpu_custom_call.1']
    #allocation7 [shape = 'u8[16384]{0}', space=vmem, size = 0x4000, scoped, tag = 'input window, operand 2, single buffered']
    #allocation8 [shape = 'u8[57344]{0}', space=vmem, size = 0xe000, scoped, tag = 'input window, operand 3, single buffered']
    #allocation9 [shape = 's32[1]{0}', space=sflag, size = 0x4, scoped, tag = 'scoped memory for tpu_custom_call.1']
    #allocation10 [shape = 'u8[16384]{0}', space=vmem, size = 0x4000, scoped, tag = 'output window, operand 0, single buffered']
    %11 = vsyncpa [#allocation3], 0
    %12 = vsyncpa [#allocation6], 0
    %13 = vsyncpa [#allocation9], 0
    %14 = vsyncpa [#allocation4], 0
    // Predicated region
    $region2: #{tpu_custom_call.1} parent=1 // pred_check
      _
    $region3: #{tpu_custom_call.1} parent=1 // pred_check_branch
      %16 = sbr.rel (0) target = $region5
    $region4: #{tpu_custom_call.1} parent=1 // pred_region
      %s18 = ssub.s32 256, 256
      %19 = vsyncadd [#allocation3], %s18
      %s20 = sshll.u32 [#allocation2], 4
      %s21 = int_to_ptr.vmem [resolvable:$true] %s20
      %26 = dma.hbm_to_vmem [thread:$0]  %s0, 256, %s21, [#allocation3], 128, 128, 8
    $region5: #{tpu_custom_call.1} parent=1 // pred_fallthru
      _
    // Predicated region
    $region6: #{tpu_custom_call.1} parent=1 // pred_check
      _
    $region7: #{tpu_custom_call.1} parent=1 // pred_check_branch
      %28 = sbr.rel (0) target = $region9
    $region8: #{tpu_custom_call.1} parent=1 // pred_region
      %s30 = ssub.s32 512, 512
      %31 = vsyncadd [#allocation6], %s30
      %s32 = sshll.u32 [#allocation5], 4
      %s33 = int_to_ptr.vmem [resolvable:$true] %s32
      %38 = dma.hbm_to_vmem [thread:$0]  %s1, 512, %s33, [#allocation6], 128, 128, 8
    $region9: #{tpu_custom_call.1} parent=1 // pred_fallthru
      _
    // Predicated region
    $region10: #{tpu_custom_call.1} parent=1 // pred_check
      _
    $region11: #{tpu_custom_call.1} parent=1 // pred_check_branch
      %40 = sbr.rel (0) target = $region13
    $region12: #{tpu_custom_call.1} parent=1 // pred_region
      %s42 = ssub.s32 512, 512
      %43 = vsyncadd [#allocation6], %s42
      %s44 = sshll.u32 [#allocation7], 4
      %s45 = int_to_ptr.vmem [resolvable:$true] %s44
      %50 = dma.hbm_to_vmem [thread:$0]  %s2, 512, %s45, [#allocation6], 128, 128, 8
    $region13: #{tpu_custom_call.1} parent=1 // pred_fallthru
      _
    // Predicated region
    $region14: #{tpu_custom_call.1} parent=1 // pred_check
      _
    $region15: #{tpu_custom_call.1} parent=1 // pred_check_branch
      %52 = sbr.rel (0) target = $region17
    $region16: #{tpu_custom_call.1} parent=1 // pred_region
      %s54 = ssub.s32 1792, 1792
      %55 = vsyncadd [#allocation9], %s54
      %s56 = sshll.u32 [#allocation8], 4
      %s57 = int_to_ptr.vmem [resolvable:$true] %s56
      %62 = dma.hbm_to_vmem [thread:$0]  %s3, 1792, %s57, [#allocation9], 128, 128, 8
    $region17: #{tpu_custom_call.1} parent=1 // pred_fallthru
      _
    // Predicated region
    $region18: #{tpu_custom_call.1} parent=1 // pred_check
      _
    $region19: #{tpu_custom_call.1} parent=1 // pred_check_branch
      %64 = sbr.rel (0) target = $region21
    $region20: #{tpu_custom_call.1} parent=1 // pred_region
      _
    $region21: #{tpu_custom_call.1} parent=1 // pred_fallthru
      _
    // Predicated region
    $region22: #{tpu_custom_call.1} parent=1 // pred_check
      _
    $region23: #{tpu_custom_call.1} parent=1 // pred_check_branch
      %66 = sbr.rel (0) target = $region25
    $region24: #{tpu_custom_call.1} parent=1 // pred_region
      _
    $region25: #{tpu_custom_call.1} parent=1 // pred_fallthru
      _
    // Predicated region
    $region26: #{tpu_custom_call.1} parent=1 // pred_check
      _
    $region27: #{tpu_custom_call.1} parent=1 // pred_check_branch
      %68 = sbr.rel (0) target = $region29
    $region28: #{tpu_custom_call.1} parent=1 // pred_region
      %69 = dma.done [#allocation3], 256
    $region29: #{tpu_custom_call.1} parent=1 // pred_fallthru
      _
    // Predicated region
    $region30: #{tpu_custom_call.1} parent=1 // pred_check
      _
    $region31: #{tpu_custom_call.1} parent=1 // pred_check_branch
      %71 = sbr.rel (0) target = $region33
    $region32: #{tpu_custom_call.1} parent=1 // pred_region
      %72 = dma.done [#allocation6], 512
    $region33: #{tpu_custom_call.1} parent=1 // pred_fallthru
      _
    // Predicated region
    $region34: #{tpu_custom_call.1} parent=1 // pred_check
      _
    $region35: #{tpu_custom_call.1} parent=1 // pred_check_branch
      %74 = sbr.rel (0) target = $region37
    $region36: #{tpu_custom_call.1} parent=1 // pred_region
      %75 = dma.done [#allocation6], 512
    $region37: #{tpu_custom_call.1} parent=1 // pred_fallthru
      _
    // Predicated region
    $region38: #{tpu_custom_call.1} parent=1 // pred_check
      _
    $region39: #{tpu_custom_call.1} parent=1 // pred_check_branch
      %77 = sbr.rel (0) target = $region41
    $region40: #{tpu_custom_call.1} parent=1 // pred_region
      %78 = dma.done [#allocation9], 1792
    $region41: #{tpu_custom_call.1} parent=1 // pred_fallthru
      _
    %v79 = vld [vmem:[#allocation8] sm:$0xff]
    %v80 = vld [vmem:[#allocation8 + $0x8] sm:$0xff]
    %v81 = vld [vmem:[#allocation8 + $0x10] sm:$0xff]
    %v82 = vld [vmem:[#allocation8 + $0x18] sm:$0xff]
    %v83 = vld [vmem:[#allocation8 + $0x20] sm:$0xff]
    %v84 = vld [vmem:[#allocation8 + $0x28] sm:$0xff]
    %v85 = vld [vmem:[#allocation8 + $0x30] sm:$0xff]
    %v86 = vld [vmem:[#allocation8 + $0x38] sm:$0xff]
    %v87 = vld [vmem:[#allocation8 + $0x40] sm:$0xff]
    %v88 = vld [vmem:[#allocation8 + $0x48] sm:$0xff]
    %v89 = vld [vmem:[#allocation8 + $0x50] sm:$0xff]
    %v90 = vld [vmem:[#allocation8 + $0x58] sm:$0xff]
    %v91 = vld [vmem:[#allocation8 + $0x60] sm:$0xff]
    %v92 = vld [vmem:[#allocation8 + $0x68] sm:$0xf]
    %v93 = vld [vmem:[%s4] sm:$0x1]
    %v94 = vld [vmem:[%s5] sm:$0x1]
    %v95 = vld [vmem:[#allocation5] sm:$0xff]
    %v96 = vld [vmem:[#allocation5 + $0x8] sm:$0xff]
    %s97 = scalar_lea.vmem [#allocation5], 16
    %v98 = vld [vmem:[%s97] sm:$0xff]
    %v99 = vld [vmem:[%s97 + $0x8] sm:$0xff]
    %102 = vrot.lane.b32.xlu0 %v98, 36
    %v103 = vpop.permute.xlu0 %102
    %104 = vrot.lane.b32.xlu0 %v99, 36
    %v105 = vpop.permute.xlu0 %104
    %vm108 = vcmask 293888
    %v109 = vsel %vm108, %v95, %v103
    %v110 = vsel %vm108, %v96, %v105
    %v111 = vld [vmem:[#allocation2] sm:$0xff]
    %v112 = vld [vmem:[#allocation2 + $0x8] sm:$0xff]
    %vm113 = vcmask 130048
    %v115 = vsel %vm113, %v111, 0
    %v118 = vsel %vm113, %v112, 0
    %120 = vmatprep.subr.mxu0 0.0
    %121 = vmatpush1.msra.mxu0 0.0
    %122 = vmatprep.subr.mxu0 0.0
    %123 = vmatpush1.msra.mxu0 0.0
    %124 = vmatprep.subr.mxu0 0.0
    %125 = vmatpush1.msra.mxu0 0.0
    %126 = vmatprep.subr.mxu0 0.0
    %127 = vmatpush1.msra.mxu0 0.0
    %128 = vmatprep.subr.mxu0 0.0
    %129 = vmatpush1.msra.mxu0 0.0
    %130 = vmatprep.subr.mxu0 0.0
    %131 = vmatpush1.msra.mxu0 0.0
    %132 = vmatprep.subr.mxu0 0.0
    %133 = vmatpush1.msra.mxu0 0.0
    %134 = vmatprep.subr.mxu0 0.0
    %135 = vmatpush1.msra.mxu0 0.0
    %136 = vmatprep.subr.mxu0 0.0
    %137 = vmatpush1.msra.mxu0 0.0
    %138 = vmatprep.subr.mxu0 0.0
    %139 = vmatpush1.msra.mxu0 0.0
    %140 = vmatprep.subr.mxu0 0.0
    %141 = vmatpush1.msra.mxu0 0.0
    %142 = vmatprep.subr.mxu0 0.0
    %143 = vmatpush1.msra.mxu0 0.0
    %144 = vmatprep.subr.mxu0 0.0
    %145 = vmatpush1.msra.mxu0 0.0
    %146 = vmatprep.subr.mxu0 0.0
    %147 = vmatpush1.msra.mxu0 0.0
    %148 = vmatprep.subr.mxu0 0.0
    %149 = vmatpush1.msra.mxu0 %v110
    %150 = vmatprep.subr.mxu0 0.0
    %151 = vmatpush1.msra.mxu0 %v109
    %152 = vmatprep.subr.mxu0 0.0
    %153 = vmatpush2.msra.mxu0 0.0
    %154 = vmatprep.subr.mxu0 0.0
    %155 = vmatpush2.msra.mxu0 0.0
    %156 = vmatprep.subr.mxu0 0.0
    %157 = vmatpush2.msra.mxu0 0.0
    %158 = vmatprep.subr.mxu0 0.0
    %159 = vmatpush2.msra.mxu0 0.0
    %160 = vmatprep.subr.mxu0 0.0
    %161 = vmatpush2.msra.mxu0 0.0
    %162 = vmatprep.subr.mxu0 0.0
    %163 = vmatpush2.msra.mxu0 0.0
    %164 = vmatprep.subr.mxu0 0.0
    %165 = vmatpush2.msra.mxu0 0.0
    %166 = vmatprep.subr.mxu0 0.0
    %167 = vmatpush2.msra.mxu0 0.0
    %168 = vmatprep.subr.mxu0 0.0
    %169 = vmatpush2.msra.mxu0 0.0
    %170 = vmatprep.subr.mxu0 0.0
    %171 = vmatpush2.msra.mxu0 0.0
    %172 = vmatprep.subr.mxu0 0.0
    %173 = vmatpush2.msra.mxu0 0.0
    %174 = vmatprep.subr.mxu0 0.0
    %175 = vmatpush2.msra.mxu0 0.0
    %176 = vmatprep.subr.mxu0 0.0
    %177 = vmatpush2.msra.mxu0 0.0
    %178 = vmatprep.subr.mxu0 0.0
    %179 = vmatpush2.msra.mxu0 0.0
    %180 = vmatprep.subr.mxu0 0.0
    %181 = vmatpush2.msra.mxu0 0.0
    %182 = vmatprep.subr.mxu0 0.0
    %183 = vmatpush2.msra.mxu0 0.0
    %184 = vmatprep.mubr.f32.mxu0 0.0
    %185 = vmatmul.mubr.f32.gmra.mxu0 %v115
    %v186 = vpop.f32.mrf.mxu0
    %v187 = vadd.f32 0.0, %v186
    %v188 = vpop.f32.mrf.mxu0
    %189 = vmatprep.mubr.f32.mxu0 0.0
    %190 = vmatmul.mubr.f32.gmra.mxu0 %v118
    %v191 = vpop.f32.mrf.mxu0
    %v192 = vadd.f32 0.0, %v191
    %v193 = vpop.f32.mrf.mxu0
    %194 = vdwg.mxu0
    %v195 = vmul.f32 %v187, 0.5
    %v196 = vmul.f32 %v192, 0.5
    %197 = vmatprep.subr.mxu0 0.0
    %198 = vmatpush1.msra.mxu0 0.0
    %199 = vmatprep.subr.mxu0 0.0
    %200 = vmatpush1.msra.mxu0 0.0
    %201 = vmatprep.subr.mxu0 0.0
    %202 = vmatpush1.msra.mxu0 0.0
    %203 = vmatprep.subr.mxu0 0.0
    %204 = vmatpush1.msra.mxu0 0.0
    %205 = vmatprep.subr.mxu0 0.0
    %206 = vmatpush1.msra.mxu0 0.0
    %207 = vmatprep.subr.mxu0 0.0
    %208 = vmatpush1.msra.mxu0 0.0
    %209 = vmatprep.subr.mxu0 0.0
    %210 = vmatpush1.msra.mxu0 0.0
    %211 = vmatprep.subr.mxu0 0.0
    %212 = vmatpush1.msra.mxu0 0.0
    %213 = vmatprep.subr.mxu0 0.0
    %214 = vmatpush1.msra.mxu0 0.0
    %215 = vmatprep.subr.mxu0 0.0
    %216 = vmatpush1.msra.mxu0 0.0
    %217 = vmatprep.subr.mxu0 0.0
    %218 = vmatpush1.msra.mxu0 0.0
    %219 = vmatprep.subr.mxu0 0.0
    %220 = vmatpush1.msra.mxu0 0.0
    %221 = vmatprep.subr.mxu0 0.0
    %222 = vmatpush1.msra.mxu0 0.0
    %223 = vmatprep.subr.mxu0 0.0
    %224 = vmatpush1.msra.mxu0 0.0
    %225 = vmatprep.subr.mxu0 0.0
    %226 = vmatpush1.msra.mxu0 %v196
    %227 = vmatprep.subr.mxu0 0.0
    %228 = vmatpush1.msra.mxu0 %v195
    %229 = vmatprep.subr.mxu0 0.0
    %230 = vmatpush2.msra.mxu0 0.0
    %231 = vmatprep.subr.mxu0 0.0
    %232 = vmatpush2.msra.mxu0 0.0
    %233 = vmatprep.subr.mxu0 0.0
    %234 = vmatpush2.msra.mxu0 0.0
    %235 = vmatprep.subr.mxu0 0.0
    %236 = vmatpush2.msra.mxu0 0.0
    %237 = vmatprep.subr.mxu0 0.0
    %238 = vmatpush2.msra.mxu0 0.0
    %239 = vmatprep.subr.mxu0 0.0
    %240 = vmatpush2.msra.mxu0 0.0
    %241 = vmatprep.subr.mxu0 0.0
    %242 = vmatpush2.msra.mxu0 0.0
    %243 = vmatprep.subr.mxu0 0.0
    %244 = vmatpush2.msra.mxu0 0.0
    %245 = vmatprep.subr.mxu0 0.0
    %246 = vmatpush2.msra.mxu0 0.0
    %247 = vmatprep.subr.mxu0 0.0
    %248 = vmatpush2.msra.mxu0 0.0
    %249 = vmatprep.subr.mxu0 0.0
    %250 = vmatpush2.msra.mxu0 0.0
    %251 = vmatprep.subr.mxu0 0.0
    %252 = vmatpush2.msra.mxu0 0.0
    %253 = vmatprep.subr.mxu0 0.0
    %254 = vmatpush2.msra.mxu0 0.0
    %255 = vmatprep.subr.mxu0 0.0
    %256 = vmatpush2.msra.mxu0 0.0
    %257 = vmatprep.subr.mxu0 0.0
    %258 = vmatpush2.msra.mxu0 0.0
    %259 = vmatprep.subr.mxu0 0.0
    %260 = vmatpush2.msra.mxu0 0.0
    %261 = vmatprep.mubr.f32.mxu0 0.0
    %262 = vmatmul.mubr.f32.gmra.mxu0 %v115
    %v263 = vpop.f32.mrf.mxu0
    %v264 = vadd.f32 0.0, %v263
    %v265 = vpop.f32.mrf.mxu0
    %266 = vmatprep.mubr.f32.mxu0 0.0
    %267 = vmatmul.mubr.f32.gmra.mxu0 %v118
    %v268 = vpop.f32.mrf.mxu0
    %v269 = vadd.f32 0.0, %v268
    %v270 = vpop.f32.mrf.mxu0
    %271 = vdwg.mxu0
    %v272 = vsub.f32 %v264, %v109
    %v273 = vsub.f32 %v269, %v110
    %276 = vrot.lane.b32.xlu0 %v195, 36
    %v277 = vpop.permute.xlu0 %276
    %278 = vrot.lane.b32.xlu0 %v196, 36
    %v279 = vpop.permute.xlu0 %278
    %284 = vrot.lane.b32.xlu0 %v272, 72
    %v285 = vpop.permute.xlu0 %284
    %286 = vrot.lane.b32.xlu0 %v273, 72
    %v287 = vpop.permute.xlu0 %286
    %v290 = vsel %vm108, %v109, %v277
    %v291 = vsel %vm108, %v110, %v279
    %vm292 = vcmask 588800
    %v293 = vsel %vm292, %v290, %v285
    %v294 = vsel %vm292, %v291, %v287
    %297 = vrot.lane.b32.xlu0 %v109, 92
    %v298 = vpop.permute.xlu0 %297
    %299 = vrot.lane.b32.xlu0 %v110, 92
    %v300 = vpop.permute.xlu0 %299
    %303 = vrot.lane.b32.xlu0 %v272, 36
    %v304 = vpop.permute.xlu0 %303
    %305 = vrot.lane.b32.xlu0 %v273, 36
    %v306 = vpop.permute.xlu0 %305
    %v309 = vsel %vm108, %v298, %v195
    %v310 = vsel %vm108, %v300, %v196
    %v311 = vsel %vm292, %v309, %v304
    %v312 = vsel %vm292, %v310, %v306
    %v313 = vld [vmem:[#allocation7] sm:$0xff]
    %v314 = vld [vmem:[#allocation7 + $0x8] sm:$0xff]
    %s315 = scalar_lea.vmem [#allocation7], 16
    %v316 = vld [vmem:[%s315] sm:$0xff]
    %v317 = vld [vmem:[%s315 + $0x8] sm:$0xff]
    %322 = vrot.lane.b32.xlu0 %v313, 32
    %v323 = vpop.permute.xlu0 %322
    %324 = vrot.lane.b32.xlu0 %v314, 32
    %v325 = vpop.permute.xlu0 %324
    %326 = vrot.lane.b32.xlu0 %v316, 32
    %v327 = vpop.permute.xlu0 %326
    %328 = vrot.lane.b32.xlu0 %v317, 32
    %v329 = vpop.permute.xlu0 %328
    %334 = vrot.lane.b32.xlu0 %v313, 64
    %v335 = vpop.permute.xlu0 %334
    %336 = vrot.lane.b32.xlu0 %v314, 64
    %v337 = vpop.permute.xlu0 %336
    %338 = vrot.lane.b32.xlu0 %v316, 64
    %v339 = vpop.permute.xlu0 %338
    %340 = vrot.lane.b32.xlu0 %v317, 64
    %v341 = vpop.permute.xlu0 %340
    %346 = vrot.lane.b32.xlu0 %v313, 96
    %v347 = vpop.permute.xlu0 %346
    %348 = vrot.lane.b32.xlu0 %v314, 96
    %v349 = vpop.permute.xlu0 %348
    %350 = vrot.lane.b32.xlu0 %v316, 96
    %v351 = vpop.permute.xlu0 %350
    %352 = vrot.lane.b32.xlu0 %v317, 96
    %v353 = vpop.permute.xlu0 %352
    %vm358 = vcmask 261120
    %v359 = vsel %vm358, %v313, %v323
    %v360 = vsel %vm358, %v314, %v325
    %v361 = vsel %vm358, %v316, %v327
    %v362 = vsel %vm358, %v317, %v329
    %vm363 = vcmask 523264
    %v364 = vsel %vm363, %v359, %v335
    %v365 = vsel %vm363, %v360, %v337
    %v366 = vsel %vm363, %v361, %v339
    %v367 = vsel %vm363, %v362, %v341
    %vm368 = vcmask 785408
    %v369 = vsel %vm368, %v364, %v347
    %v370 = vsel %vm368, %v365, %v349
    %v371 = vsel %vm368, %v366, %v351
    %v372 = vsel %vm368, %v367, %v353
    %v374 = vlaneseq
    %v375 = vshrl.u32 %v374, 7
    %v376 = vsub.s32 0, %v375
    %v377 = vrot.slane %v93, %v376
    %v379 = vmul.f32 %v377, %v369
    %v380 = vmul.f32 %v377, %v370
    %v381 = vmul.f32 %v377, %v371
    %v382 = vmul.f32 %v377, %v372
    %vm383 = vcmask 883712
    %v385 = vsel %vm383, %v293, 0
    %v388 = vsel %vm383, %v294, 0
    %v391 = vsel %vm383, %v311, 0
    %v394 = vsel %vm383, %v312, 0
    %vm396 = vcmask 1043456
    %v398 = vsel %vm396, %v92, 0
    %400 = vmatprep.subr.mxu0 0.0
    %401 = vmatpush1.msra.mxu0 0.0
    %402 = vmatprep.subr.mxu0 0.0
    %403 = vmatpush1.msra.mxu0 0.0
    %404 = vmatprep.subr.mxu0 0.0
    %405 = vmatpush1.msra.mxu0 %v398
    %406 = vmatprep.subr.mxu0 0.0
    %407 = vmatpush1.msra.mxu0 %v91
    %408 = vmatprep.subr.mxu0 0.0
    %409 = vmatpush1.msra.mxu0 %v90
    %410 = vmatprep.subr.mxu0 0.0
    %411 = vmatpush1.msra.mxu0 %v89
    %412 = vmatprep.subr.mxu0 0.0
    %413 = vmatpush1.msra.mxu0 %v88
    %414 = vmatprep.subr.mxu0 0.0
    %415 = vmatpush1.msra.mxu0 %v87
    %416 = vmatprep.subr.mxu0 0.0
    %417 = vmatpush1.msra.mxu0 %v86
    %418 = vmatprep.subr.mxu0 0.0
    %419 = vmatpush1.msra.mxu0 %v85
    %420 = vmatprep.subr.mxu0 0.0
    %421 = vmatpush1.msra.mxu0 %v84
    %422 = vmatprep.subr.mxu0 0.0
    %423 = vmatpush1.msra.mxu0 %v83
    %424 = vmatprep.subr.mxu0 0.0
    %425 = vmatpush1.msra.mxu0 %v82
    %426 = vmatprep.subr.mxu0 0.0
    %427 = vmatpush1.msra.mxu0 %v81
    %428 = vmatprep.subr.mxu0 0.0
    %429 = vmatpush1.msra.mxu0 %v80
    %430 = vmatprep.subr.mxu0 0.0
    %431 = vmatpush1.msra.mxu0 %v79
    %432 = vmatprep.subr.mxu0 0.0
    %433 = vmatpush2.msra.mxu0 0.0
    %434 = vmatprep.subr.mxu0 0.0
    %435 = vmatpush2.msra.mxu0 0.0
    %436 = vmatprep.subr.mxu0 0.0
    %437 = vmatpush2.msra.mxu0 0.0
    %438 = vmatprep.subr.mxu0 0.0
    %439 = vmatpush2.msra.mxu0 0.0
    %440 = vmatprep.subr.mxu0 0.0
    %441 = vmatpush2.msra.mxu0 0.0
    %442 = vmatprep.subr.mxu0 0.0
    %443 = vmatpush2.msra.mxu0 0.0
    %444 = vmatprep.subr.mxu0 0.0
    %445 = vmatpush2.msra.mxu0 0.0
    %446 = vmatprep.subr.mxu0 0.0
    %447 = vmatpush2.msra.mxu0 0.0
    %448 = vmatprep.subr.mxu0 0.0
    %449 = vmatpush2.msra.mxu0 0.0
    %450 = vmatprep.subr.mxu0 0.0
    %451 = vmatpush2.msra.mxu0 0.0
    %452 = vmatprep.subr.mxu0 0.0
    %453 = vmatpush2.msra.mxu0 0.0
    %454 = vmatprep.subr.mxu0 0.0
    %455 = vmatpush2.msra.mxu0 0.0
    %456 = vmatprep.subr.mxu0 0.0
    %457 = vmatpush2.msra.mxu0 0.0
    %458 = vmatprep.subr.mxu0 0.0
    %459 = vmatpush2.msra.mxu0 0.0
    %460 = vmatprep.subr.mxu0 0.0
    %461 = vmatpush2.msra.mxu0 0.0
    %462 = vmatprep.subr.mxu0 0.0
    %463 = vmatpush2.msra.mxu0 0.0
    %464 = vmatprep.mubr.f32.mxu0 0.0
    %465 = vmatmul.mubr.f32.gmra.mxu0 %v385
    %v466 = vpop.f32.mrf.mxu0
    %v467 = vadd.f32 %v379, %v466
    %v468 = vpop.f32.mrf.mxu0
    %469 = vmatprep.mubr.f32.mxu0 0.0
    %470 = vmatmul.mubr.f32.gmra.mxu0 %v388
    %v471 = vpop.f32.mrf.mxu0
    %v472 = vadd.f32 %v380, %v471
    %v473 = vpop.f32.mrf.mxu0
    %474 = vmatprep.mubr.f32.mxu0 0.0
    %475 = vmatmul.mubr.f32.gmra.mxu0 %v391
    %v476 = vpop.f32.mrf.mxu0
    %v477 = vadd.f32 %v381, %v476
    %v478 = vpop.f32.mrf.mxu0
    %479 = vmatprep.mubr.f32.mxu0 0.0
    %480 = vmatmul.mubr.f32.gmra.mxu0 %v394
    %v481 = vpop.f32.mrf.mxu0
    %v482 = vadd.f32 %v382, %v481
    %v483 = vpop.f32.mrf.mxu0
    %484 = vdwg.mxu0
    %v486 = vlaneseq
    %v487 = vshrl.u32 %v486, 7
    %v488 = vsub.s32 0, %v487
    %v489 = vrot.slane %v94, %v488
    %v491 = vadd.f32 %v467, %v489
    %v492 = vadd.f32 %v472, %v489
    %v493 = vadd.f32 %v477, %v489
    %v494 = vadd.f32 %v482, %v489
    %v495 = vlaneseq
    %v496 = vand.u32 %v495, 127
    %vm497 = vcmp.ge.s32.totalorder %v496, 64
    %vm498 = vcmp.lt.s32.totalorder %v496, 96
    %vm499 = vmand %vm497, %vm498
    %v500 = vtanh.pop %v491
    %v501 = vtanh.pop %v492
    %v502 = vtanh.pop %v493
    %v503 = vtanh.pop %v494
    %v504 = vxor.u32 %v491, 2147483648
    %v505 = vxor.u32 %v492, 2147483648
    %v506 = vxor.u32 %v493, 2147483648
    %v507 = vxor.u32 %v494, 2147483648
    %v508 = vmul.f32 %v504, 1.442695
    %v509 = vpow.pop %v508
    %v510 = vmul.f32 %v505, 1.442695
    %v511 = vpow.pop %v510
    %v512 = vmul.f32 %v506, 1.442695
    %v513 = vpow.pop %v512
    %v514 = vmul.f32 %v507, 1.442695
    %v515 = vpow.pop %v514
    %v516 = vadd.f32 %v509, 1.0
    %v517 = vadd.f32 %v511, 1.0
    %v518 = vadd.f32 %v513, 1.0
    %v519 = vadd.f32 %v515, 1.0
    %v520 = vrcp.pop %v516
    %v521 = vmul.f32 1.0, %v520
    %v522 = vrcp.pop %v517
    %v523 = vmul.f32 1.0, %v522
    %v524 = vrcp.pop %v518
    %v525 = vmul.f32 1.0, %v524
    %v526 = vrcp.pop %v519
    %v527 = vmul.f32 1.0, %v526
    %v528 = vsel %vm499, %v500, %v521
    %v529 = vsel %vm499, %v501, %v523
    %v530 = vsel %vm499, %v502, %v525
    %v531 = vsel %vm499, %v503, %v527
    %v532 = vmul.f32 %v528, %v323
    %v533 = vmul.f32 %v529, %v325
    %v534 = vmul.f32 %v530, %v327
    %v535 = vmul.f32 %v531, %v329
    %540 = vrot.lane.b32.xlu0 %v528, 64
    %v541 = vpop.permute.xlu0 %540
    %542 = vrot.lane.b32.xlu0 %v529, 64
    %v543 = vpop.permute.xlu0 %542
    %544 = vrot.lane.b32.xlu0 %v530, 64
    %v545 = vpop.permute.xlu0 %544
    %546 = vrot.lane.b32.xlu0 %v531, 64
    %v547 = vpop.permute.xlu0 %546
    %v552 = vmul.f32 %v528, %v541
    %v553 = vmul.f32 %v529, %v543
    %v554 = vmul.f32 %v530, %v545
    %v555 = vmul.f32 %v531, %v547
    %560 = vrot.lane.b32.xlu0 %v552, 32
    %v561 = vpop.permute.xlu0 %560
    %562 = vrot.lane.b32.xlu0 %v553, 32
    %v563 = vpop.permute.xlu0 %562
    %564 = vrot.lane.b32.xlu0 %v554, 32
    %v565 = vpop.permute.xlu0 %564
    %566 = vrot.lane.b32.xlu0 %v555, 32
    %v567 = vpop.permute.xlu0 %566
    %v572 = vadd.f32 %v532, %v561
    %v573 = vadd.f32 %v533, %v563
    %v574 = vadd.f32 %v534, %v565
    %v575 = vadd.f32 %v535, %v567
    %v576 = vtanh.pop %v572
    %v577 = vtanh.pop %v573
    %v578 = vtanh.pop %v574
    %v579 = vtanh.pop %v575
    %584 = vrot.lane.b32.xlu0 %v576, 64
    %v585 = vpop.permute.xlu0 %584
    %586 = vrot.lane.b32.xlu0 %v577, 64
    %v587 = vpop.permute.xlu0 %586
    %588 = vrot.lane.b32.xlu0 %v578, 64
    %v589 = vpop.permute.xlu0 %588
    %590 = vrot.lane.b32.xlu0 %v579, 64
    %v591 = vpop.permute.xlu0 %590
    %v596 = vmul.f32 %v528, %v585
    %v597 = vmul.f32 %v529, %v587
    %v598 = vmul.f32 %v530, %v589
    %v599 = vmul.f32 %v531, %v591
    %604 = vrot.lane.b32.xlu0 %v596, 32
    %v605 = vpop.permute.xlu0 %604
    %606 = vrot.lane.b32.xlu0 %v597, 32
    %v607 = vpop.permute.xlu0 %606
    %608 = vrot.lane.b32.xlu0 %v598, 32
    %v609 = vpop.permute.xlu0 %608
    %610 = vrot.lane.b32.xlu0 %v599, 32
    %v611 = vpop.permute.xlu0 %610
    %v616 = vsel %vm358, %v605, %v572
    %v617 = vsel %vm358, %v607, %v573
    %v618 = vsel %vm358, %v609, %v574
    %v619 = vsel %vm358, %v611, %v575
    %620 = vst.msk [vmem:[#allocation10] sm:$0xff] %vm363, %v616
    %621 = vst.msk [vmem:[#allocation10 + $0x8] sm:$0xff] %vm363, %v617
    %s622 = scalar_lea.vmem [#allocation10], 16
    %623 = vst.msk [vmem:[%s622] sm:$0xff] %vm363, %v618
    %624 = vst.msk [vmem:[%s622 + $0x8] sm:$0xff] %vm363, %v619
    // Predicated region
    $region42: #{tpu_custom_call.1} parent=1 // pred_check
      _
    $region43: #{tpu_custom_call.1} parent=1 // pred_check_branch
      %626 = sbr.rel (0) target = $region45
    $region44: #{tpu_custom_call.1} parent=1 // pred_region
      %s628 = ssub.s32 512, 512
      %629 = vsyncadd [#allocation4], %s628
      %s630 = sshll.u32 [#allocation10], 4
      %s631 = int_to_ptr.vmem [resolvable:$true] %s630
      %636 = dma.vmem_to_hbm [thread:$0]  %s631, 512, %s6, [#allocation4], 128, 128, 8
    $region45: #{tpu_custom_call.1} parent=1 // pred_fallthru
      _
    // Predicated region
    $region46: #{tpu_custom_call.1} parent=1 // pred_check
      _
    $region47: #{tpu_custom_call.1} parent=1 // pred_check_branch
      %638 = sbr.rel (0) target = $region49
    $region48: #{tpu_custom_call.1} parent=1 // pred_region
      %639 = dma.done [#allocation4], 512
    $region49: #{tpu_custom_call.1} parent=1 // pred_fallthru
      _
    %640 = vsyncpa [#allocation3], 1
    %641 = vsyncpa [#allocation6], 1
    %642 = vsyncpa [#allocation9], 1
    %643 = vsyncpa [#allocation4], 1

</llo_original>
